<compile_context>
chip_gen: v5e
topology: v5e:2x2
jax: 0.10.0
libtpu: 0.0.40
codegen_flags: <defaults>
</compile_context>

<pallas_src>
import jax
import jax.numpy as jnp
from jax.experimental import pallas as pl
from jax.experimental.pallas import tpu as pltpu

EPS = 1e-5
DIMS = (7 * 7, 128, 64, 32, 3)   # layer widths of the PyTorch module
OUT_PAD = 8                      # padded logit width (real logits in cols 0..2)
MAX_TB = 1024                    # batch-tile upper bound (sweep 512-2048)


def _round_up(x, m):
    return ((x + m - 1) // m) * m


def _mlp_kernel(x_ref, w1_ref, b1_ref, w2_ref, b2_ref, w3_ref, b3_ref,
                w4_ref, b4_ref, o_ref):
    # x_ref : (TB, 49)  bf16 input rows
    # wK_ref: real-shaped, BN-folded bf16 weights (in, out layout)
    # bK_ref: (1, out)  f32 BN-folded bias
    # o_ref : (TB, 8)   f32 padded logits (cols 0..2 real)
    h = jnp.dot(x_ref[...], w1_ref[...],
                preferred_element_type=jnp.float32) + b1_ref[...]
    h = jnp.maximum(h, 0.0).astype(jnp.bfloat16)
    h = jnp.dot(h, w2_ref[...],
                preferred_element_type=jnp.float32) + b2_ref[...]
    h = jnp.maximum(h, 0.0).astype(jnp.bfloat16)
    h = jnp.dot(h, w3_ref[...],
                preferred_element_type=jnp.float32) + b3_ref[...]
    h = jnp.maximum(h, 0.0).astype(jnp.bfloat16)
    o_ref[...] = (jnp.dot(h, w4_ref[...],
                          preferred_element_type=jnp.float32)
                  + b4_ref[...]).astype(o_ref.dtype)


def prepare_params(raw):
    """Fold eval-mode BatchNorm1d into the Linears; cast weights to bf16.

    raw holds PyTorch-layout params: w{i} (out,in), b{i} (out,),
    g{i}/beta{i}/m{i}/v{i} BatchNorm1d gamma/beta/running_mean/running_var.
    Only the final layer's output dim is padded (3 -> OUT_PAD) with zeros.
    """
    prepped = {}
    for i in range(1, 5):
        wt = raw[f"w{i}"].T                       # (in, out)
        b = raw[f"b{i}"]                          # (out,)
        if i < 4:                                 # layers 1..3 have BN + ReLU
            s = raw[f"g{i}"] / jnp.sqrt(raw[f"v{i}"] + EPS)
            wt = wt * s[None, :]
            b = (b - raw[f"m{i}"]) * s + raw[f"beta{i}"]
        if i == 4:                                # pad logits 3 -> 8 (zeros)
            pad = OUT_PAD - wt.shape[1]
            wt = jnp.pad(wt, ((0, 0), (0, pad)))
            b = jnp.pad(b, (0, pad))
        prepped[f"w{i}"] = wt.astype(jnp.bfloat16)
        prepped[f"b{i}"] = b.astype(jnp.float32)[None, :]
    return prepped


@jax.jit
def fully_connected(x, pp):
    """Forward pass matching FullyConnected.forward (eval-mode BatchNorm)."""
    B = x.shape[0]
    # x.squeeze().reshape(B, -1) == x.reshape(B, -1) for this module.
    xf = x.reshape(B, -1).astype(jnp.bfloat16)
    d_in = xf.shape[1]                            # 49, kept unpadded

    b8 = _round_up(max(B, 1), 8)
    tb = min(MAX_TB, b8)                          # big tiles: amortize step cost
    if b8 > 8:
        # keep >= 2 grid steps so v7x (2 TCs) can shard the batch across cores
        tb = min(tb, _round_up((b8 + 1) // 2, 8))
    b_pad = _round_up(b8, tb)
    if b_pad != B:
        xf = jnp.pad(xf, ((0, b_pad - B), (0, 0)))

    out = pl.pallas_call(
        _mlp_kernel,
        out_shape=jax.ShapeDtypeStruct((b_pad, OUT_PAD), jnp.float32),
        grid_spec=pltpu.PrefetchScalarGridSpec(
            num_scalar_prefetch=0,
            grid=(b_pad // tb,),
            in_specs=[
                pl.BlockSpec((tb, d_in), lambda i: (i, 0)),
                pl.BlockSpec(pp["w1"].shape, lambda i: (0, 0)),
                pl.BlockSpec(pp["b1"].shape, lambda i: (0, 0)),
                pl.BlockSpec(pp["w2"].shape, lambda i: (0, 0)),
                pl.BlockSpec(pp["b2"].shape, lambda i: (0, 0)),
                pl.BlockSpec(pp["w3"].shape, lambda i: (0, 0)),
                pl.BlockSpec(pp["b3"].shape, lambda i: (0, 0)),
                pl.BlockSpec(pp["w4"].shape, lambda i: (0, 0)),
                pl.BlockSpec(pp["b4"].shape, lambda i: (0, 0)),
            ],
            out_specs=pl.BlockSpec((tb, OUT_PAD), lambda i: (i, 0)),
        ),
        compiler_params=pltpu.CompilerParams(
            dimension_semantics=("parallel",)),
    )(xf, pp["w1"], pp["b1"], pp["w2"], pp["b2"],
      pp["w3"], pp["b3"], pp["w4"], pp["b4"])

    res = out[:B, :DIMS[-1]]
    # final .squeeze(): only has an effect when B == 1
    if B == 1:
        res = res[0]
    return res


def make_params(key):
    """Deterministic synthetic parameters matching FullyConnected.__init__."""
    keys = jax.random.split(key, 24)
    raw = {}
    ki = iter(range(24))
    for i in range(1, 5):
        fan_in, fan_out = DIMS[i - 1], DIMS[i]
        bound = fan_in ** -0.5
        raw[f"w{i}"] = jax.random.uniform(
            keys[next(ki)], (fan_out, fan_in), jnp.float32, -bound, bound)
        raw[f"b{i}"] = jax.random.uniform(
            keys[next(ki)], (fan_out,), jnp.float32, -bound, bound)
        if i < 4:
            raw[f"g{i}"] = jax.random.uniform(
                keys[next(ki)], (fan_out,), jnp.float32, 0.5, 1.5)
            raw[f"beta{i}"] = jax.random.normal(
                keys[next(ki)], (fan_out,), jnp.float32) * 0.1
            raw[f"m{i}"] = jax.random.normal(
                keys[next(ki)], (fan_out,), jnp.float32) * 0.1
            raw[f"v{i}"] = jax.random.uniform(
                keys[next(ki)], (fan_out,), jnp.float32, 0.5, 1.5)
    return raw


def _reference(x, raw):
    """Pure-JAX f32 reference of the PyTorch forward (eval-mode BatchNorm1d)."""
    h = x.reshape(x.shape[0], -1)
    for i in range(1, 4):
        h = h @ raw[f"w{i}"].T + raw[f"b{i}"]
        h = (h - raw[f"m{i}"]) / jnp.sqrt(raw[f"v{i}"] + EPS) \
            * raw[f"g{i}"] + raw[f"beta{i}"]
        h = jnp.maximum(h, 0.0)
    h = h @ raw["w4"].T + raw["b4"]
    if x.shape[0] == 1:
        h = h[0]
    return h


if __name__ == "__main__":
    key = jax.random.PRNGKey(0)
    kx, kx2, kp = jax.random.split(key, 3)

    raw = make_params(kp)
    # TODO(synk): training-mode BatchNorm1d (batch statistics) is not
    # implemented; BN is folded with running stats (PyTorch eval semantics).
    pp = prepare_params(raw)

    # Primary small-shape run (batch=2, 1x7x7 feature map).
    B = 2
    x = jax.random.normal(kx, (B, 1, 7, 7), jnp.float32)
    out = jax.block_until_ready(fully_connected(x, pp))
    ref = _reference(x, raw)
    assert out.shape == (B, 3), out.shape
    # bf16 operands with f32 accumulation -> relaxed tolerance
    assert jnp.allclose(out, ref, atol=5e-2, rtol=5e-2), float(
        jnp.max(jnp.abs(out - ref)))

    # Secondary run exercising multi-tile grid + row padding (B not %8).
    B2 = 200
    x2 = jax.random.normal(kx2, (B2, 1, 7, 7), jnp.float32)
    out2 = jax.block_until_ready(fully_connected(x2, pp))
    ref2 = _reference(x2, raw)
    assert out2.shape == (B2, 3), out2.shape
    assert jnp.allclose(out2, ref2, atol=5e-2, rtol=5e-2), float(
        jnp.max(jnp.abs(out2 - ref2)))

    print("KERNEL_OK")
</pallas_src>

<mosaic_0001>
module attributes {stable_mosaic.version = 11 : i64} {
  func.func @_mlp_kernel(%arg0: i32, %arg1: memref<8x49xbf16, #tpu.memory_space<vmem>>, %arg2: memref<49x128xbf16, #tpu.memory_space<vmem>>, %arg3: memref<1x128xf32, #tpu.memory_space<vmem>>, %arg4: memref<128x64xbf16, #tpu.memory_space<vmem>>, %arg5: memref<1x64xf32, #tpu.memory_space<vmem>>, %arg6: memref<64x32xbf16, #tpu.memory_space<vmem>>, %arg7: memref<1x32xf32, #tpu.memory_space<vmem>>, %arg8: memref<32x8xbf16, #tpu.memory_space<vmem>>, %arg9: memref<1x8xf32, #tpu.memory_space<vmem>>, %arg10: memref<8x8xf32, #tpu.memory_space<vmem>>) attributes {dimension_semantics = [#tpu.dimension_semantics<parallel>], iteration_bounds = array<i64: 1>, scalar_prefetch = 0 : i64, scratch_operands = 0 : i64, tpu.core_type = #tpu.core_type<tc>, window_params = [{transform_indices = @transform_0, window_bounds = array<i64: 8, 49>}, {pipeline_mode = #tpu.pipeline_mode<synchronous>, transform_indices = @transform_1, window_bounds = array<i64: 49, 128>}, {pipeline_mode = #tpu.pipeline_mode<synchronous>, transform_indices = @transform_2, window_bounds = array<i64: 1, 128>}, {pipeline_mode = #tpu.pipeline_mode<synchronous>, transform_indices = @transform_3, window_bounds = array<i64: 128, 64>}, {pipeline_mode = #tpu.pipeline_mode<synchronous>, transform_indices = @transform_4, window_bounds = array<i64: 1, 64>}, {pipeline_mode = #tpu.pipeline_mode<synchronous>, transform_indices = @transform_5, window_bounds = array<i64: 64, 32>}, {pipeline_mode = #tpu.pipeline_mode<synchronous>, transform_indices = @transform_6, window_bounds = array<i64: 1, 32>}, {pipeline_mode = #tpu.pipeline_mode<synchronous>, transform_indices = @transform_7, window_bounds = array<i64: 32, 8>}, {pipeline_mode = #tpu.pipeline_mode<synchronous>, transform_indices = @transform_8, window_bounds = array<i64: 1, 8>}, {transform_indices = @transform_9, window_bounds = array<i64: 8, 8>}]} {
    %c0 = arith.constant 0 : index
    %c0_0 = arith.constant 0 : index
    %0 = vector.load %arg1[%c0, %c0_0] : memref<8x49xbf16, #tpu.memory_space<vmem>>, vector<8x49xbf16>
    %c0_1 = arith.constant 0 : index
    %c0_2 = arith.constant 0 : index
    %1 = vector.load %arg2[%c0_1, %c0_2] : memref<49x128xbf16, #tpu.memory_space<vmem>>, vector<49x128xbf16>
    %cst = arith.constant dense<0.000000e+00> : vector<8x128xf32>
    %2 = tpu.matmul %0, %1, %cst {dimension_numbers = #tpu.dot_dimension_numbers<[1], [0], [0], [1], [0, 0, 1, 1], [], []>} : vector<8x49xbf16>, vector<49x128xbf16>, vector<8x128xf32> -> vector<8x128xf32>
    %c0_3 = arith.constant 0 : index
    %c0_4 = arith.constant 0 : index
    %3 = vector.load %arg3[%c0_3, %c0_4] : memref<1x128xf32, #tpu.memory_space<vmem>>, vector<1x128xf32>
    %4 = vector.broadcast %3 : vector<1x128xf32> to vector<8x128xf32>
    %5 = arith.addf %2, %4 : vector<8x128xf32>
    %cst_5 = arith.constant 0.000000e+00 : f32
    %6 = vector.broadcast %cst_5 : f32 to vector<8x128xf32>
    %7 = arith.maximumf %5, %6 : vector<8x128xf32>
    %8 = arith.truncf %7 : vector<8x128xf32> to vector<8x128xbf16>
    %c0_6 = arith.constant 0 : index
    %c0_7 = arith.constant 0 : index
    %9 = vector.load %arg4[%c0_6, %c0_7] : memref<128x64xbf16, #tpu.memory_space<vmem>>, vector<128x64xbf16>
    %cst_8 = arith.constant dense<0.000000e+00> : vector<8x64xf32>
    %10 = tpu.matmul %8, %9, %cst_8 {dimension_numbers = #tpu.dot_dimension_numbers<[1], [0], [0], [1], [0, 0, 1, 1], [], []>} : vector<8x128xbf16>, vector<128x64xbf16>, vector<8x64xf32> -> vector<8x64xf32>
    %c0_9 = arith.constant 0 : index
    %c0_10 = arith.constant 0 : index
    %11 = vector.load %arg5[%c0_9, %c0_10] : memref<1x64xf32, #tpu.memory_space<vmem>>, vector<1x64xf32>
    %12 = vector.broadcast %11 : vector<1x64xf32> to vector<8x64xf32>
    %13 = arith.addf %10, %12 : vector<8x64xf32>
    %cst_11 = arith.constant 0.000000e+00 : f32
    %14 = vector.broadcast %cst_11 : f32 to vector<8x64xf32>
    %15 = arith.maximumf %13, %14 : vector<8x64xf32>
    %16 = arith.truncf %15 : vector<8x64xf32> to vector<8x64xbf16>
    %c0_12 = arith.constant 0 : index
    %c0_13 = arith.constant 0 : index
    %17 = vector.load %arg6[%c0_12, %c0_13] : memref<64x32xbf16, #tpu.memory_space<vmem>>, vector<64x32xbf16>
    %cst_14 = arith.constant dense<0.000000e+00> : vector<8x32xf32>
    %18 = tpu.matmul %16, %17, %cst_14 {dimension_numbers = #tpu.dot_dimension_numbers<[1], [0], [0], [1], [0, 0, 1, 1], [], []>} : vector<8x64xbf16>, vector<64x32xbf16>, vector<8x32xf32> -> vector<8x32xf32>
    %c0_15 = arith.constant 0 : index
    %c0_16 = arith.constant 0 : index
    %19 = vector.load %arg7[%c0_15, %c0_16] : memref<1x32xf32, #tpu.memory_space<vmem>>, vector<1x32xf32>
    %20 = vector.broadcast %19 : vector<1x32xf32> to vector<8x32xf32>
    %21 = arith.addf %18, %20 : vector<8x32xf32>
    %cst_17 = arith.constant 0.000000e+00 : f32
    %22 = vector.broadcast %cst_17 : f32 to vector<8x32xf32>
    %23 = arith.maximumf %21, %22 : vector<8x32xf32>
    %24 = arith.truncf %23 : vector<8x32xf32> to vector<8x32xbf16>
    %c0_18 = arith.constant 0 : index
    %c0_19 = arith.constant 0 : index
    %25 = vector.load %arg8[%c0_18, %c0_19] : memref<32x8xbf16, #tpu.memory_space<vmem>>, vector<32x8xbf16>
    %cst_20 = arith.constant dense<0.000000e+00> : vector<8x8xf32>
    %26 = tpu.matmul %24, %25, %cst_20 {dimension_numbers = #tpu.dot_dimension_numbers<[1], [0], [0], [1], [0, 0, 1, 1], [], []>} : vector<8x32xbf16>, vector<32x8xbf16>, vector<8x8xf32> -> vector<8x8xf32>
    %c0_21 = arith.constant 0 : index
    %c0_22 = arith.constant 0 : index
    %27 = vector.load %arg9[%c0_21, %c0_22] : memref<1x8xf32, #tpu.memory_space<vmem>>, vector<1x8xf32>
    %28 = vector.broadcast %27 : vector<1x8xf32> to vector<8x8xf32>
    %29 = arith.addf %26, %28 : vector<8x8xf32>
    %c0_23 = arith.constant 0 : index
    %c0_24 = arith.constant 0 : index
    %30 = vector.load %arg10[%c0_23, %c0_24] : memref<8x8xf32, #tpu.memory_space<vmem>>, vector<8x8xf32>
    tpu.vector_store %arg10[%c0_23, %c0_24], %29 {strides = array<i32>} : memref<8x8xf32, #tpu.memory_space<vmem>>, vector<8x8xf32>,
    return
  }
  func.func @transform_0(%arg0: i32) -> (i32, i32) {
    %c0_i32 = arith.constant 0 : i32
    %c0_i32_0 = arith.constant 0 : i32
    return %arg0, %c0_i32 : i32, i32
  }
  func.func @transform_1(%arg0: i32) -> (i32, i32) {
    %c0_i32 = arith.constant 0 : i32
    %c0_i32_0 = arith.constant 0 : i32
    %c0_i32_1 = arith.constant 0 : i32
    return %c0_i32, %c0_i32_0 : i32, i32
  }
  func.func @transform_2(%arg0: i32) -> (i32, i32) {
    %c0_i32 = arith.constant 0 : i32
    %c0_i32_0 = arith.constant 0 : i32
    %c0_i32_1 = arith.constant 0 : i32
    return %c0_i32, %c0_i32_0 : i32, i32
  }
  func.func @transform_3(%arg0: i32) -> (i32, i32) {
    %c0_i32 = arith.constant 0 : i32
    %c0_i32_0 = arith.constant 0 : i32
    %c0_i32_1 = arith.constant 0 : i32
    return %c0_i32, %c0_i32_0 : i32, i32
  }
  func.func @transform_4(%arg0: i32) -> (i32, i32) {
    %c0_i32 = arith.constant 0 : i32
    %c0_i32_0 = arith.constant 0 : i32
    %c0_i32_1 = arith.constant 0 : i32
    return %c0_i32, %c0_i32_0 : i32, i32
  }
  func.func @transform_5(%arg0: i32) -> (i32, i32) {
    %c0_i32 = arith.constant 0 : i32
    %c0_i32_0 = arith.constant 0 : i32
    %c0_i32_1 = arith.constant 0 : i32
    return %c0_i32, %c0_i32_0 : i32, i32
  }
  func.func @transform_6(%arg0: i32) -> (i32, i32) {
    %c0_i32 = arith.constant 0 : i32
    %c0_i32_0 = arith.constant 0 : i32
    %c0_i32_1 = arith.constant 0 : i32
    return %c0_i32, %c0_i32_0 : i32, i32
  }
  func.func @transform_7(%arg0: i32) -> (i32, i32) {
    %c0_i32 = arith.constant 0 : i32
    %c0_i32_0 = arith.constant 0 : i32
    %c0_i32_1 = arith.constant 0 : i32
    return %c0_i32, %c0_i32_0 : i32, i32
  }
  func.func @transform_8(%arg0: i32) -> (i32, i32) {
    %c0_i32 = arith.constant 0 : i32
    %c0_i32_0 = arith.constant 0 : i32
    %c0_i32_1 = arith.constant 0 : i32
    return %c0_i32, %c0_i32_0 : i32, i32
  }
  func.func @transform_9(%arg0: i32) -> (i32, i32) {
    %c0_i32 = arith.constant 0 : i32
    %c0_i32_0 = arith.constant 0 : i32
    return %arg0, %c0_i32 : i32, i32
  }
}

</mosaic_0001>

<llo_original>
// kernel: fully_connected.1
$region0: #{fully_connected.1}
  #allocation0 [shape = 'u32[]', space=smem, size = 0x4, offset = 0x4, fixed_abs, tag = 'smem constant byte address 0x4 - core index']
  #allocation1 [shape = 'u32[72,128]{1,0:T(1,128)}', space=vmem, size = 0x9000, scoped, tag = 'internal scratch']
  %s0 = inlined_call_operand.vmem [shape: bf16[8,49], index: 0, kind: input, shape index: {}]
  %s1 = inlined_call_operand.vmem [shape: bf16[49,128], index: 1, kind: input, shape index: {}]
  %s2 = inlined_call_operand.vmem [shape: f32[1,128], index: 2, kind: input, shape index: {}]
  %s3 = inlined_call_operand.vmem [shape: bf16[128,64], index: 3, kind: input, shape index: {}]
  %s4 = inlined_call_operand.vmem [shape: f32[1,64], index: 4, kind: input, shape index: {}]
  %s5 = inlined_call_operand.vmem [shape: bf16[64,32], index: 5, kind: input, shape index: {}]
  %s6 = inlined_call_operand.vmem [shape: f32[1,32], index: 6, kind: input, shape index: {}]
  %s7 = inlined_call_operand.vmem [shape: bf16[32,8], index: 7, kind: input, shape index: {}]
  %s8 = inlined_call_operand.vmem [shape: f32[1,8], index: 8, kind: input, shape index: {}]
  %s9 = inlined_call_operand.vmem [shape: f32[8,8], index: 9, kind: output, shape index: {}]
  %s10 = sld [smem:[#allocation0]]
  $region46: #{fully_connected.1} parent=0
    _
  %s12 = ssub.s32 1, %s10
  %s13 = scalar_select 0, %s12, %s10
  // Predicated region
  $region2: #{fully_connected.1} parent=0 // pred_check
    _
  $region3: #{fully_connected.1} parent=0 // pred_check_branch
    %15 = sbr.rel (0) target = $region5
  $region4: #{fully_connected.1} parent=0 // pred_region
    _
  $region5: #{fully_connected.1} parent=0 // pred_fallthru
    _
  // Predicated region
  $region6: #{fully_connected.1} parent=0 // pred_check
    _
  $region7: #{fully_connected.1} parent=0 // pred_check_branch
    %17 = sbr.rel (0) target = $region9
  $region8: #{fully_connected.1} parent=0 // pred_region
    _
  $region9: #{fully_connected.1} parent=0 // pred_fallthru
    _
  // Predicated region
  $region10: #{fully_connected.1} parent=0 // pred_check
    _
  $region11: #{fully_connected.1} parent=0 // pred_check_branch
    %19 = sbr.rel (0) target = $region13
  $region12: #{fully_connected.1} parent=0 // pred_region
    _
  $region13: #{fully_connected.1} parent=0 // pred_fallthru
    _
  // Predicated region
  $region14: #{fully_connected.1} parent=0 // pred_check
    _
  $region15: #{fully_connected.1} parent=0 // pred_check_branch
    %21 = sbr.rel (0) target = $region17
  $region16: #{fully_connected.1} parent=0 // pred_region
    _
  $region17: #{fully_connected.1} parent=0 // pred_fallthru
    _
  // Predicated region
  $region18: #{fully_connected.1} parent=0 // pred_check
    _
  $region19: #{fully_connected.1} parent=0 // pred_check_branch
    %23 = sbr.rel (0) target = $region21
  $region20: #{fully_connected.1} parent=0 // pred_region
    _
  $region21: #{fully_connected.1} parent=0 // pred_fallthru
    _
  // Predicated region
  $region22: #{fully_connected.1} parent=0 // pred_check
    _
  $region23: #{fully_connected.1} parent=0 // pred_check_branch
    %25 = sbr.rel (0) target = $region25
  $region24: #{fully_connected.1} parent=0 // pred_region
    _
  $region25: #{fully_connected.1} parent=0 // pred_fallthru
    _
  // Predicated region
  $region26: #{fully_connected.1} parent=0 // pred_check
    _
  $region27: #{fully_connected.1} parent=0 // pred_check_branch
    %27 = sbr.rel (0) target = $region29
  $region28: #{fully_connected.1} parent=0 // pred_region
    _
  $region29: #{fully_connected.1} parent=0 // pred_fallthru
    _
  // Predicated region
  $region30: #{fully_connected.1} parent=0 // pred_check
    _
  $region31: #{fully_connected.1} parent=0 // pred_check_branch
    %29 = sbr.rel (0) target = $region33
  $region32: #{fully_connected.1} parent=0 // pred_region
    _
  $region33: #{fully_connected.1} parent=0 // pred_fallthru
    _
  // Predicated region
  $region34: #{fully_connected.1} parent=0 // pred_check
    _
  $region35: #{fully_connected.1} parent=0 // pred_check_branch
    %31 = sbr.rel (0) target = $region37
  $region36: #{fully_connected.1} parent=0 // pred_region
    _
  $region37: #{fully_connected.1} parent=0 // pred_fallthru
    _
  %v33 = vld [vmem:[%s0] sm:$0xf]
  %v34 = vld [vmem:[%s1] sm:$0xf]
  %v35 = vld [vmem:[%s1 + $0x4] sm:$0xf]
  %v36 = vld [vmem:[%s1 + $0x8] sm:$0xf]
  %v37 = vld [vmem:[%s1 + $0xc] sm:$0xf]
  %v38 = vld [vmem:[%s1 + $0x10] sm:$0xf]
  %v39 = vld [vmem:[%s1 + $0x14] sm:$0xf]
  %v40 = vld [vmem:[%s1 + $0x18] sm:$0x1]
  %v41 = vld [vmem:[%s2] sm:$0x1]
  %v43 = vperm.slane %v41, 0
  %v52 = vunpack.c.l.b16 %v34
  %v53 = vunpack.c.l.b16 %v35
  %v54 = vunpack.c.l.b16 %v36
  %v55 = vunpack.c.l.b16 %v37
  %v56 = vunpack.c.l.b16 %v38
  %v57 = vunpack.c.l.b16 %v39
  %v58 = vunpack.c.l.b16 %v40
  %v59 = vpack.c.b16 %v53, %v52
  %v60 = vpack.c.b16 %v55, %v54
  %v61 = vpack.c.b16 %v57, %v56
  %v62 = vpack.c.b16 %v58, %v58
  %vm66 = vcmask 400384
  %v68 = vsel %vm66, %v33, 0
  %vm70 = vcmask 1040384
  %v71 = vsel 0, 4294967295, 65535
  %v72 = vsel %vm70, %v71, 0
  %v74 = vand.u32 %v62, %v72
  %76 = vmatpush.bf16.msra.mxu0 0
  %77 = vmatpush.bf16.msra.mxu0 0
  %78 = vmatpush.bf16.msra.mxu0 0
  %79 = vmatpush.bf16.msra.mxu0 0
  %80 = vmatpush.bf16.msra.mxu0 %v74
  %81 = vmatpush.bf16.msra.mxu0 %v61
  %82 = vmatpush.bf16.msra.mxu0 %v60
  %83 = vmatpush.bf16.msra.mxu0 %v59
  %84 = vmatmul.bf16.gmra.mxu0 %v68
  %v85 = vpop.f32.mrf.mxu0
  %v86 = vadd.f32 %v43, %v85
  %v87 = vpop.f32.mrf.mxu0
  %88 = vdwg.mxu0
  %v89 = vmax.f32 %v86, 0.0
  %v90 = vpack.c.bf16 %v89, %v89
  %v91 = vld [vmem:[%s3] sm:$0xf]
  %v92 = vld [vmem:[%s3 + $0x4] sm:$0xf]
  %v93 = vld [vmem:[%s3 + $0x8] sm:$0xf]
  %v94 = vld [vmem:[%s3 + $0xc] sm:$0xf]
  %v95 = vld [vmem:[%s3 + $0x10] sm:$0xf]
  %v96 = vld [vmem:[%s3 + $0x14] sm:$0xf]
  %v97 = vld [vmem:[%s3 + $0x18] sm:$0xf]
  %v98 = vld [vmem:[%s3 + $0x1c] sm:$0xf]
  %v99 = vld [vmem:[%s3 + $0x20] sm:$0xf]
  %v100 = vld [vmem:[%s3 + $0x24] sm:$0xf]
  %v101 = vld [vmem:[%s3 + $0x28] sm:$0xf]
  %v102 = vld [vmem:[%s3 + $0x2c] sm:$0xf]
  %v103 = vld [vmem:[%s3 + $0x30] sm:$0xf]
  %v104 = vld [vmem:[%s3 + $0x34] sm:$0xf]
  %v105 = vld [vmem:[%s3 + $0x38] sm:$0xf]
  %v106 = vld [vmem:[%s3 + $0x3c] sm:$0xf]
  %v107 = vld [vmem:[%s4] sm:$0x1]
  %v109 = vperm.slane %v107, 0
  %v127 = vunpack.c.l.b16 %v91
  %v128 = vunpack.c.l.b16 %v92
  %v129 = vunpack.c.l.b16 %v93
  %v130 = vunpack.c.l.b16 %v94
  %v131 = vunpack.c.l.b16 %v95
  %v132 = vunpack.c.l.b16 %v96
  %v133 = vunpack.c.l.b16 %v97
  %v134 = vunpack.c.l.b16 %v98
  %v135 = vunpack.c.l.b16 %v99
  %v136 = vunpack.c.l.b16 %v100
  %v137 = vunpack.c.l.b16 %v101
  %v138 = vunpack.c.l.b16 %v102
  %v139 = vunpack.c.l.b16 %v103
  %v140 = vunpack.c.l.b16 %v104
  %v141 = vunpack.c.l.b16 %v105
  %v142 = vunpack.c.l.b16 %v106
  %v143 = vpack.c.b16 %v128, %v127
  %v144 = vpack.c.b16 %v130, %v129
  %v145 = vpack.c.b16 %v132, %v131
  %v146 = vpack.c.b16 %v134, %v133
  %v147 = vpack.c.b16 %v136, %v135
  %v148 = vpack.c.b16 %v138, %v137
  %v149 = vpack.c.b16 %v140, %v139
  %v150 = vpack.c.b16 %v142, %v141
  %159 = vmatpush.bf16.msra.mxu0 %v150
  %160 = vmatpush.bf16.msra.mxu0 %v149
  %161 = vmatpush.bf16.msra.mxu0 %v148
  %162 = vmatpush.bf16.msra.mxu0 %v147
  %163 = vmatpush.bf16.msra.mxu0 %v146
  %164 = vmatpush.bf16.msra.mxu0 %v145
  %165 = vmatpush.bf16.msra.mxu0 %v144
  %166 = vmatpush.bf16.msra.mxu0 %v143
  %167 = vmatmul.bf16.gmra.mxu0 %v90
  %v168 = vpop.f32.mrf.mxu0
  %v169 = vadd.f32 %v109, %v168
  %v170 = vpop.f32.mrf.mxu0
  %171 = vdwg.mxu0
  %v172 = vmax.f32 %v169, 0.0
  %v173 = vpack.c.bf16 %v172, %v172
  %v174 = vld [vmem:[%s5] sm:$0xf]
  %v175 = vld [vmem:[%s5 + $0x4] sm:$0xf]
  %v176 = vld [vmem:[%s5 + $0x8] sm:$0xf]
  %v177 = vld [vmem:[%s5 + $0xc] sm:$0xf]
  %v178 = vld [vmem:[%s5 + $0x10] sm:$0xf]
  %v179 = vld [vmem:[%s5 + $0x14] sm:$0xf]
  %v180 = vld [vmem:[%s5 + $0x18] sm:$0xf]
  %v181 = vld [vmem:[%s5 + $0x1c] sm:$0xf]
  %v182 = vld [vmem:[%s6] sm:$0x1]
  %v184 = vperm.slane %v182, 0
  %v194 = vunpack.c.l.b16 %v174
  %v195 = vunpack.c.l.b16 %v175
  %v196 = vunpack.c.l.b16 %v176
  %v197 = vunpack.c.l.b16 %v177
  %v198 = vunpack.c.l.b16 %v178
  %v199 = vunpack.c.l.b16 %v179
  %v200 = vunpack.c.l.b16 %v180
  %v201 = vunpack.c.l.b16 %v181
  %v202 = vpack.c.b16 %v195, %v194
  %v203 = vpack.c.b16 %v197, %v196
  %v204 = vpack.c.b16 %v199, %v198
  %v205 = vpack.c.b16 %v201, %v200
  %vm210 = vcmask 523264
  %v212 = vsel %vm210, %v173, 0
  %214 = vmatpush.bf16.msra.mxu0 0
  %215 = vmatpush.bf16.msra.mxu0 0
  %216 = vmatpush.bf16.msra.mxu0 0
  %217 = vmatpush.bf16.msra.mxu0 0
  %218 = vmatpush.bf16.msra.mxu0 %v205
  %219 = vmatpush.bf16.msra.mxu0 %v204
  %220 = vmatpush.bf16.msra.mxu0 %v203
  %221 = vmatpush.bf16.msra.mxu0 %v202
  %222 = vmatmul.bf16.gmra.mxu0 %v212
  %v223 = vpop.f32.mrf.mxu0
  %v224 = vadd.f32 %v184, %v223
  %v225 = vpop.f32.mrf.mxu0
  %226 = vdwg.mxu0
  %v227 = vmax.f32 %v224, 0.0
  %v228 = vpack.c.bf16 %v227, %v227
  %v229 = vld [vmem:[%s7] sm:$0xf]
  %v230 = vld [vmem:[%s7 + $0x4] sm:$0xf]
  %v231 = vld [vmem:[%s7 + $0x8] sm:$0xf]
  %v232 = vld [vmem:[%s7 + $0xc] sm:$0xf]
  %v233 = vld [vmem:[%s8] sm:$0x1]
  %v235 = vperm.slane %v233, 0
  %v241 = vunpack.c.l.b16 %v229
  %v242 = vunpack.c.l.b16 %v230
  %v243 = vunpack.c.l.b16 %v231
  %v244 = vunpack.c.l.b16 %v232
  %v245 = vpack.c.b16 %v242, %v241
  %v246 = vpack.c.b16 %v244, %v243
  %vm249 = vcmask 261120
  %v251 = vsel %vm249, %v228, 0
  %253 = vmatpush.bf16.msra.mxu0 0
  %254 = vmatpush.bf16.msra.mxu0 0
  %255 = vmatpush.bf16.msra.mxu0 0
  %256 = vmatpush.bf16.msra.mxu0 0
  %257 = vmatpush.bf16.msra.mxu0 0
  %258 = vmatpush.bf16.msra.mxu0 0
  %259 = vmatpush.bf16.msra.mxu0 %v246
  %260 = vmatpush.bf16.msra.mxu0 %v245
  %261 = vmatmul.bf16.gmra.mxu0 %v251
  %v262 = vpop.f32.mrf.mxu0
  %v263 = vadd.f32 %v235, %v262
  %v264 = vpop.f32.mrf.mxu0
  %265 = vdwg.mxu0
  %vm266 = vcmask 64512
  %267 = vst.msk [vmem:[%s9] sm:$0xff] %vm266, %v263
  // Predicated region
  $region38: #{fully_connected.1} parent=0 // pred_check
    _
  $region39: #{fully_connected.1} parent=0 // pred_check_branch
    %269 = sbr.rel (0) target = $region41
  $region40: #{fully_connected.1} parent=0 // pred_region
    _
  $region41: #{fully_connected.1} parent=0 // pred_fallthru
    _
  // Predicated region
  $region42: #{fully_connected.1} parent=0 // pred_check
    _
  $region43: #{fully_connected.1} parent=0 // pred_check_branch
    %271 = sbr.rel (0) target = $region45
  $region44: #{fully_connected.1} parent=0 // pred_region
    _
  $region45: #{fully_connected.1} parent=0 // pred_fallthru
    _

</llo_original>
